<compile_context>
chip_gen: v6e
topology: v6e:2x2x1
jax: 0.10.0
libtpu: 0.0.40
codegen_flags: <defaults>
</compile_context>

<pallas_src>
import functools

import jax
import jax.numpy as jnp
from jax import lax
from jax.experimental import pallas as pl
from jax.experimental.pallas import tpu as pltpu

KSIZE = 3
STRIDE = 2
PADDING = 1
BN_EPS = 1e-5


def _sep_tconv_kernel(xs_ref, wdw_ref, wpw_ref, g1_ref, b1_ref, g2_ref, b2_ref,
                      o_ref, *, n, cin, cout, h_in, w_in, h_out, w_out):
    """Fused depthwise transposed conv + BN1 + ReLU + 1x1 conv + BN2.

    xs_ref:  (4, Cin, N*H_in*W_in)  four (dm,dn)-shifted compact inputs,
             (dm,dn) in {0,1}^2, lane index = n*H_in*W_in + m*W_in + w
    wdw_ref: (9, Cin, 1)            depthwise taps, [kh*3+kw, c, 0]
    wpw_ref: (Cout, Cin)            1x1 pointwise weights
    g*/b*:   (C, 1)                 BN affine parameters
    o_ref:   (Cout, 4*N*H_in*W_in)  parity-major lane-dense output,
             lane = (ph*2+pw)*N*HW + n*HW + m*W_in + w
    """
    hw = h_in * w_in
    nhw = n * hw

    x00 = xs_ref[0]
    x01 = xs_ref[1]
    x10 = xs_ref[2]
    x11 = xs_ref[3]

    def tap(kh, kw):
        # natural (Cin, 1) column view -- no lane extract needed
        return wdw_ref[kh * KSIZE + kw]

    # Depthwise ConvTranspose2d (stride 2, pad 1, k=3) decomposed by output
    # parity (ph, pw):  out[2m+ph, 2w+pw] = p_{ph,pw}[m, w]
    p00 = x00 * tap(1, 1)
    p01 = x00 * tap(1, 2) + x01 * tap(1, 0)
    p10 = x00 * tap(2, 1) + x10 * tap(0, 1)
    p11 = (x00 * tap(2, 2) + x01 * tap(2, 0)
           + x10 * tap(0, 2) + x11 * tap(0, 0))

    # Lane-concatenated slab: lane = (ph*2+pw)*NHW + n*HW + m*W + w
    p_all = jnp.concatenate([p00, p01, p10, p11], axis=-1)      # (Cin, 4*NHW)

    # Validity mask only when output_size drops the last row/column
    # (output_padding == 0 on that axis).  Static Python branch -> zero cost
    # for the common output_padding == 1 case.
    mask_h = h_out < 2 * h_in
    mask_w = w_out < 2 * w_in
    if mask_h or mask_w:
        lane = lax.broadcasted_iota(jnp.int32, (1, nhw), 1)
        ones = jnp.ones((1, nhw), jnp.float32)
        row_ok = ((lane // w_in) % h_in < h_in - 1) if mask_h else None
        col_ok = (lane % w_in < w_in - 1) if mask_w else None

        def pmask(ph, pw):
            ok = None
            if mask_h and ph == 1:
                ok = row_ok
            if mask_w and pw == 1:
                ok = col_ok if ok is None else (ok & col_ok)
            return ones if ok is None else ok.astype(jnp.float32)

        mask_all = jnp.concatenate(
            [pmask(0, 0), pmask(0, 1), pmask(1, 0), pmask(1, 1)], axis=-1)
    else:
        mask_all = None

    count = float(n * h_out * w_out)

    # --- BN1: one-pass per-channel batch stats (training mode).
    #     Single cross-lane reduction per statistic.
    pm = p_all if mask_all is None else p_all * mask_all
    s1 = jnp.sum(pm, axis=1, keepdims=True)                     # (Cin, 1)
    q1 = jnp.sum(p_all * pm, axis=1, keepdims=True)             # (Cin, 1)
    mean1 = s1 / count
    var1 = q1 / count - mean1 * mean1
    scale1 = g1_ref[...] * lax.rsqrt(var1 + BN_EPS)             # (Cin, 1)
    shift1 = b1_ref[...] - mean1 * scale1

    # --- BN1 apply + ReLU, then 1x1 pointwise conv as ONE MXU matmul ---
    y1 = jnp.maximum(p_all * scale1 + shift1, 0.0)              # (Cin, 4*NHW)
    y2 = jnp.dot(wpw_ref[...], y1,
                 preferred_element_type=jnp.float32)            # (Cout, 4*NHW)

    # --- BN2 (training mode), no ReLU (matches forward()) ---
    ym = y2 if mask_all is None else y2 * mask_all
    s2 = jnp.sum(ym, axis=1, keepdims=True)                     # (Cout, 1)
    q2 = jnp.sum(y2 * ym, axis=1, keepdims=True)                # (Cout, 1)
    mean2 = s2 / count
    var2 = q2 / count - mean2 * mean2
    scale2 = g2_ref[...] * lax.rsqrt(var2 + BN_EPS)             # (Cout, 1)
    shift2 = b2_ref[...] - mean2 * scale2

    # Lane-dense, full-lane unmasked store.
    o_ref[...] = y2 * scale2 + shift2


def separable_transpose_convolution(x_nchw, w_dw, w_pw, g1, b1, g2, b2,
                                    output_size):
    """Forward pass matching the PyTorch module (training-mode BN)."""
    n, cin, h_in, w_in = x_nchw.shape
    cout = w_pw.shape[0]
    h_out, w_out = output_size

    # output_padding implied by output_size (as ConvTranspose2d resolves it)
    opad_h = h_out - ((h_in - 1) * STRIDE - 2 * PADDING + KSIZE)
    opad_w = w_out - ((w_in - 1) * STRIDE - 2 * PADDING + KSIZE)
    assert 0 <= opad_h < STRIDE and 0 <= opad_w < STRIDE, "invalid output_size"

    hw = h_in * w_in
    nhw = n * hw
    x = x_nchw.astype(jnp.float32)

    # glue: channels-in-sublanes compact input; four (row,col)-shifted copies
    # (one transpose + one pad, then slices of the same buffer).
    xt = jnp.transpose(x, (1, 0, 2, 3))                          # (Cin, N, H, W)
    xp = jnp.pad(xt, ((0, 0), (0, 0), (0, 1), (0, 1)))
    xs = jnp.stack([xp[:, :, dm:dm + h_in, dn:dn + w_in].reshape(cin, nhw)
                    for dm in (0, 1) for dn in (0, 1)], axis=0)  # (4, Cin, NHW)

    # glue: taps as (9, Cin, 1) so each tap is a natural (Cin, 1) column view
    wdw3 = jnp.transpose(w_dw[:, 0].reshape(cin, KSIZE * KSIZE),
                         (1, 0)).reshape(KSIZE * KSIZE, cin, 1).astype(jnp.float32)
    wp2 = w_pw[:, :, 0, 0].astype(jnp.float32)                   # (Cout, Cin)
    g1c = g1.reshape(cin, 1).astype(jnp.float32)
    b1c = b1.reshape(cin, 1).astype(jnp.float32)
    g2c = g2.reshape(cout, 1).astype(jnp.float32)
    b2c = b2.reshape(cout, 1).astype(jnp.float32)

    kernel = functools.partial(
        _sep_tconv_kernel, n=n, cin=cin, cout=cout,
        h_in=h_in, w_in=w_in, h_out=h_out, w_out=w_out)

    full = lambda shape: pl.BlockSpec(shape, lambda i: (0,) * len(shape))
    out_flat = pl.pallas_call(
        kernel,
        grid=(1,),
        in_specs=[full(xs.shape), full(wdw3.shape), full(wp2.shape),
                  full(g1c.shape), full(b1c.shape),
                  full(g2c.shape), full(b2c.shape)],
        out_specs=full((cout, 4 * nhw)),
        out_shape=jax.ShapeDtypeStruct((cout, 4 * nhw), jnp.float32),
        compiler_params=pltpu.CompilerParams(
            dimension_semantics=("arbitrary",)),
    )(xs, wdw3, wp2, g1c, b1c, g2c, b2c)

    # glue: parity interleave back to NCHW (pure layout plumbing).
    # NOTE: in the output_padding==0 path the masked-out lanes of out_flat hold
    # unnormalized garbage and are only dropped by the final slice below.
    y = out_flat.reshape(cout, 2, 2, n, h_in, w_in)       # (co, ph, pw, n, m, w)
    y = jnp.transpose(y, (3, 0, 4, 1, 5, 2))              # (n, co, m, ph, w, pw)
    y = y.reshape(n, cout, 2 * h_in, 2 * w_in)
    return y[:, :, :h_out, :w_out]


def _reference_forward(x, w_dw, w_pw, g1, b1, g2, b2, output_size):
    """Pure-JAX reference (lax conv), mirrors PyTorch semantics."""
    n, cin, h_in, w_in = x.shape
    h_out, w_out = output_size
    opad_h = h_out - ((h_in - 1) * STRIDE - 2 * PADDING + KSIZE)
    opad_w = w_out - ((w_in - 1) * STRIDE - 2 * PADDING + KSIZE)
    rhs = jnp.flip(w_dw, axis=(2, 3))
    y = lax.conv_general_dilated(
        x, rhs, window_strides=(1, 1),
        padding=((KSIZE - 1 - PADDING, KSIZE - 1 - PADDING + opad_h),
                 (KSIZE - 1 - PADDING, KSIZE - 1 - PADDING + opad_w)),
        lhs_dilation=(STRIDE, STRIDE),
        dimension_numbers=('NCHW', 'OIHW', 'NCHW'),
        feature_group_count=cin)
    m1 = jnp.mean(y, axis=(0, 2, 3), keepdims=True)
    v1 = jnp.mean((y - m1) ** 2, axis=(0, 2, 3), keepdims=True)
    y = (y - m1) / jnp.sqrt(v1 + BN_EPS) * g1.reshape(1, -1, 1, 1) + b1.reshape(1, -1, 1, 1)
    y = jnp.maximum(y, 0.0)
    y2 = jnp.einsum('nchw,oc->nohw', y, w_pw[:, :, 0, 0])
    m2 = jnp.mean(y2, axis=(0, 2, 3), keepdims=True)
    v2 = jnp.mean((y2 - m2) ** 2, axis=(0, 2, 3), keepdims=True)
    return (y2 - m2) / jnp.sqrt(v2 + BN_EPS) * g2.reshape(1, -1, 1, 1) + b2.reshape(1, -1, 1, 1)


if __name__ == "__main__":
    N, C_IN, C_OUT = 2, 4, 8
    H_IN = W_IN = 8

    key = jax.random.PRNGKey(0)
    k1, k2, k3, k4, k5, k6, kx = jax.random.split(key, 7)
    # deterministic parameter init (shapes from the module's __init__)
    w_dw = 0.2 * jax.random.normal(k1, (C_IN, 1, KSIZE, KSIZE), jnp.float32)   # conv1.weight
    w_pw = 0.2 * jax.random.normal(k2, (C_OUT, C_IN, 1, 1), jnp.float32)       # conv2.weight
    g1 = 1.0 + 0.1 * jax.random.normal(k3, (C_IN,), jnp.float32)               # bn1.weight
    b1 = 0.1 * jax.random.normal(k4, (C_IN,), jnp.float32)                     # bn1.bias
    g2 = 1.0 + 0.1 * jax.random.normal(k5, (C_OUT,), jnp.float32)              # bn2.weight
    b2 = 0.1 * jax.random.normal(k6, (C_OUT,), jnp.float32)                    # bn2.bias

    x = jax.random.normal(kx, (N, C_IN, H_IN, W_IN), jnp.float32)

    # (16,16) -> output_padding 1 (fast unmasked path); (15,15) -> output_padding 0
    for output_size in ((16, 16), (15, 15)):
        out = separable_transpose_convolution(x, w_dw, w_pw, g1, b1, g2, b2,
                                              output_size)
        out = jax.block_until_ready(out)
        assert out.shape == (N, C_OUT) + output_size, out.shape

        ref = jax.block_until_ready(
            _reference_forward(x, w_dw, w_pw, g1, b1, g2, b2, output_size))
        err = float(jnp.max(jnp.abs(out - ref)))
        assert err < 5e-4, (output_size, err)

    print("KERNEL_OK")
</pallas_src>

<mosaic_0001>
module attributes {stable_mosaic.version = 11 : i64} {
  func.func @_sep_tconv_kernel(%arg0: i32, %arg1: memref<4x4x128xf32, #tpu.memory_space<vmem>>, %arg2: memref<9x4x1xf32, #tpu.memory_space<vmem>>, %arg3: memref<8x4xf32, #tpu.memory_space<vmem>>, %arg4: memref<4x1xf32, #tpu.memory_space<vmem>>, %arg5: memref<4x1xf32, #tpu.memory_space<vmem>>, %arg6: memref<8x1xf32, #tpu.memory_space<vmem>>, %arg7: memref<8x1xf32, #tpu.memory_space<vmem>>, %arg8: memref<8x512xf32, #tpu.memory_space<vmem>>) attributes {dimension_semantics = [#tpu.dimension_semantics<arbitrary>], iteration_bounds = array<i64: 1>, scalar_prefetch = 0 : i64, scratch_operands = 0 : i64, tpu.core_type = #tpu.core_type<tc>, window_params = [{pipeline_mode = #tpu.pipeline_mode<synchronous>, transform_indices = @transform_0, window_bounds = array<i64: 4, 4, 128>}, {pipeline_mode = #tpu.pipeline_mode<synchronous>, transform_indices = @transform_1, window_bounds = array<i64: 9, 4, 1>}, {pipeline_mode = #tpu.pipeline_mode<synchronous>, transform_indices = @transform_2, window_bounds = array<i64: 8, 4>}, {pipeline_mode = #tpu.pipeline_mode<synchronous>, transform_indices = @transform_3, window_bounds = array<i64: 4, 1>}, {pipeline_mode = #tpu.pipeline_mode<synchronous>, transform_indices = @transform_4, window_bounds = array<i64: 4, 1>}, {pipeline_mode = #tpu.pipeline_mode<synchronous>, transform_indices = @transform_5, window_bounds = array<i64: 8, 1>}, {pipeline_mode = #tpu.pipeline_mode<synchronous>, transform_indices = @transform_6, window_bounds = array<i64: 8, 1>}, {pipeline_mode = #tpu.pipeline_mode<synchronous>, transform_indices = @transform_7, window_bounds = array<i64: 8, 512>}]} {
    %c0 = arith.constant 0 : index
    %c0_0 = arith.constant 0 : index
    %c0_1 = arith.constant 0 : index
    %0 = vector.load %arg1[%c0, %c0_0, %c0_1] : memref<4x4x128xf32, #tpu.memory_space<vmem>>, vector<1x4x128xf32>
    %1 = vector.shape_cast %0 : vector<1x4x128xf32> to vector<4x128xf32>
    %c1 = arith.constant 1 : index
    %c0_2 = arith.constant 0 : index
    %c0_3 = arith.constant 0 : index
    %2 = vector.load %arg1[%c1, %c0_2, %c0_3] : memref<4x4x128xf32, #tpu.memory_space<vmem>>, vector<1x4x128xf32>
    %3 = vector.shape_cast %2 : vector<1x4x128xf32> to vector<4x128xf32>
    %c2 = arith.constant 2 : index
    %c0_4 = arith.constant 0 : index
    %c0_5 = arith.constant 0 : index
    %4 = vector.load %arg1[%c2, %c0_4, %c0_5] : memref<4x4x128xf32, #tpu.memory_space<vmem>>, vector<1x4x128xf32>
    %5 = vector.shape_cast %4 : vector<1x4x128xf32> to vector<4x128xf32>
    %c3 = arith.constant 3 : index
    %c0_6 = arith.constant 0 : index
    %c0_7 = arith.constant 0 : index
    %6 = vector.load %arg1[%c3, %c0_6, %c0_7] : memref<4x4x128xf32, #tpu.memory_space<vmem>>, vector<1x4x128xf32>
    %7 = vector.shape_cast %6 : vector<1x4x128xf32> to vector<4x128xf32>
    %c4 = arith.constant 4 : index
    %c0_8 = arith.constant 0 : index
    %c0_9 = arith.constant 0 : index
    %8 = vector.load %arg2[%c4, %c0_8, %c0_9] : memref<9x4x1xf32, #tpu.memory_space<vmem>>, vector<1x4x1xf32>
    %9 = vector.shape_cast %8 : vector<1x4x1xf32> to vector<4x1xf32>
    %10 = vector.broadcast %9 : vector<4x1xf32> to vector<4x128xf32>
    %11 = arith.mulf %1, %10 : vector<4x128xf32>
    %c5 = arith.constant 5 : index
    %c0_10 = arith.constant 0 : index
    %c0_11 = arith.constant 0 : index
    %12 = vector.load %arg2[%c5, %c0_10, %c0_11] : memref<9x4x1xf32, #tpu.memory_space<vmem>>, vector<1x4x1xf32>
    %13 = vector.shape_cast %12 : vector<1x4x1xf32> to vector<4x1xf32>
    %14 = vector.broadcast %13 : vector<4x1xf32> to vector<4x128xf32>
    %15 = arith.mulf %1, %14 : vector<4x128xf32>
    %c3_12 = arith.constant 3 : index
    %c0_13 = arith.constant 0 : index
    %c0_14 = arith.constant 0 : index
    %16 = vector.load %arg2[%c3_12, %c0_13, %c0_14] : memref<9x4x1xf32, #tpu.memory_space<vmem>>, vector<1x4x1xf32>
    %17 = vector.shape_cast %16 : vector<1x4x1xf32> to vector<4x1xf32>
    %18 = vector.broadcast %17 : vector<4x1xf32> to vector<4x128xf32>
    %19 = arith.mulf %3, %18 : vector<4x128xf32>
    %20 = arith.addf %15, %19 : vector<4x128xf32>
    %c7 = arith.constant 7 : index
    %c0_15 = arith.constant 0 : index
    %c0_16 = arith.constant 0 : index
    %21 = vector.load %arg2[%c7, %c0_15, %c0_16] : memref<9x4x1xf32, #tpu.memory_space<vmem>>, vector<1x4x1xf32>
    %22 = vector.shape_cast %21 : vector<1x4x1xf32> to vector<4x1xf32>
    %23 = vector.broadcast %22 : vector<4x1xf32> to vector<4x128xf32>
    %24 = arith.mulf %1, %23 : vector<4x128xf32>
    %c1_17 = arith.constant 1 : index
    %c0_18 = arith.constant 0 : index
    %c0_19 = arith.constant 0 : index
    %25 = vector.load %arg2[%c1_17, %c0_18, %c0_19] : memref<9x4x1xf32, #tpu.memory_space<vmem>>, vector<1x4x1xf32>
    %26 = vector.shape_cast %25 : vector<1x4x1xf32> to vector<4x1xf32>
    %27 = vector.broadcast %26 : vector<4x1xf32> to vector<4x128xf32>
    %28 = arith.mulf %5, %27 : vector<4x128xf32>
    %29 = arith.addf %24, %28 : vector<4x128xf32>
    %c8 = arith.constant 8 : index
    %c0_20 = arith.constant 0 : index
    %c0_21 = arith.constant 0 : index
    %30 = vector.load %arg2[%c8, %c0_20, %c0_21] : memref<9x4x1xf32, #tpu.memory_space<vmem>>, vector<1x4x1xf32>
    %31 = vector.shape_cast %30 : vector<1x4x1xf32> to vector<4x1xf32>
    %32 = vector.broadcast %31 : vector<4x1xf32> to vector<4x128xf32>
    %33 = arith.mulf %1, %32 : vector<4x128xf32>
    %c6 = arith.constant 6 : index
    %c0_22 = arith.constant 0 : index
    %c0_23 = arith.constant 0 : index
    %34 = vector.load %arg2[%c6, %c0_22, %c0_23] : memref<9x4x1xf32, #tpu.memory_space<vmem>>, vector<1x4x1xf32>
    %35 = vector.shape_cast %34 : vector<1x4x1xf32> to vector<4x1xf32>
    %36 = vector.broadcast %35 : vector<4x1xf32> to vector<4x128xf32>
    %37 = arith.mulf %3, %36 : vector<4x128xf32>
    %38 = arith.addf %33, %37 : vector<4x128xf32>
    %c2_24 = arith.constant 2 : index
    %c0_25 = arith.constant 0 : index
    %c0_26 = arith.constant 0 : index
    %39 = vector.load %arg2[%c2_24, %c0_25, %c0_26] : memref<9x4x1xf32, #tpu.memory_space<vmem>>, vector<1x4x1xf32>
    %40 = vector.shape_cast %39 : vector<1x4x1xf32> to vector<4x1xf32>
    %41 = vector.broadcast %40 : vector<4x1xf32> to vector<4x128xf32>
    %42 = arith.mulf %5, %41 : vector<4x128xf32>
    %43 = arith.addf %38, %42 : vector<4x128xf32>
    %c0_27 = arith.constant 0 : index
    %c0_28 = arith.constant 0 : index
    %c0_29 = arith.constant 0 : index
    %44 = vector.load %arg2[%c0_27, %c0_28, %c0_29] : memref<9x4x1xf32, #tpu.memory_space<vmem>>, vector<1x4x1xf32>
    %45 = vector.shape_cast %44 : vector<1x4x1xf32> to vector<4x1xf32>
    %46 = vector.broadcast %45 : vector<4x1xf32> to vector<4x128xf32>
    %47 = arith.mulf %7, %46 : vector<4x128xf32>
    %48 = arith.addf %43, %47 : vector<4x128xf32>
    %49 = tpu.concatenate %11, %20, %29, %48 in 1 : vector<4x128xf32>, vector<4x128xf32>, vector<4x128xf32>, vector<4x128xf32> -> vector<4x512xf32>
    %cst = arith.constant dense<0.000000e+00> : vector<4xf32>
    %50 = vector.multi_reduction <add>, %49, %cst [1] : vector<4x512xf32> to vector<4xf32>
    %51 = vector.shape_cast %50 : vector<4xf32> to vector<4x1xf32>
    %52 = arith.mulf %49, %49 : vector<4x512xf32>
    %cst_30 = arith.constant dense<0.000000e+00> : vector<4xf32>
    %53 = vector.multi_reduction <add>, %52, %cst_30 [1] : vector<4x512xf32> to vector<4xf32>
    %54 = vector.shape_cast %53 : vector<4xf32> to vector<4x1xf32>
    %cst_31 = arith.constant 5.120000e+02 : f32
    %55 = vector.broadcast %cst_31 : f32 to vector<4x1xf32>
    %56 = arith.divf %51, %55 : vector<4x1xf32>
    %cst_32 = arith.constant 5.120000e+02 : f32
    %57 = vector.broadcast %cst_32 : f32 to vector<4x1xf32>
    %58 = arith.divf %54, %57 : vector<4x1xf32>
    %59 = arith.mulf %56, %56 : vector<4x1xf32>
    %60 = arith.subf %58, %59 : vector<4x1xf32>
    %c0_33 = arith.constant 0 : index
    %c0_34 = arith.constant 0 : index
    %61 = vector.load %arg4[%c0_33, %c0_34] : memref<4x1xf32, #tpu.memory_space<vmem>>, vector<4x1xf32>
    %cst_35 = arith.constant 9.99999974E-6 : f32
    %62 = vector.broadcast %cst_35 : f32 to vector<4x1xf32>
    %63 = arith.addf %60, %62 : vector<4x1xf32>
    %64 = math.rsqrt %63 : vector<4x1xf32>
    %65 = arith.mulf %61, %64 : vector<4x1xf32>
    %c0_36 = arith.constant 0 : index
    %c0_37 = arith.constant 0 : index
    %66 = vector.load %arg5[%c0_36, %c0_37] : memref<4x1xf32, #tpu.memory_space<vmem>>, vector<4x1xf32>
    %67 = arith.mulf %56, %65 : vector<4x1xf32>
    %68 = arith.subf %66, %67 : vector<4x1xf32>
    %69 = vector.broadcast %65 : vector<4x1xf32> to vector<4x512xf32>
    %70 = arith.mulf %49, %69 : vector<4x512xf32>
    %71 = vector.broadcast %68 : vector<4x1xf32> to vector<4x512xf32>
    %72 = arith.addf %70, %71 : vector<4x512xf32>
    %cst_38 = arith.constant 0.000000e+00 : f32
    %73 = vector.broadcast %cst_38 : f32 to vector<4x512xf32>
    %74 = arith.maximumf %72, %73 : vector<4x512xf32>
    %c0_39 = arith.constant 0 : index
    %c0_40 = arith.constant 0 : index
    %75 = vector.load %arg3[%c0_39, %c0_40] : memref<8x4xf32, #tpu.memory_space<vmem>>, vector<8x4xf32>
    %cst_41 = arith.constant dense<0.000000e+00> : vector<8x512xf32>
    %76 = tpu.matmul %75, %74, %cst_41 {dimension_numbers = #tpu.dot_dimension_numbers<[1], [0], [0], [1], [0, 0, 1, 1], [], []>} : vector<8x4xf32>, vector<4x512xf32>, vector<8x512xf32> -> vector<8x512xf32>
    %cst_42 = arith.constant dense<0.000000e+00> : vector<8xf32>
    %77 = vector.multi_reduction <add>, %76, %cst_42 [1] : vector<8x512xf32> to vector<8xf32>
    %78 = vector.shape_cast %77 : vector<8xf32> to vector<8x1xf32>
    %79 = arith.mulf %76, %76 : vector<8x512xf32>
    %cst_43 = arith.constant dense<0.000000e+00> : vector<8xf32>
    %80 = vector.multi_reduction <add>, %79, %cst_43 [1] : vector<8x512xf32> to vector<8xf32>
    %81 = vector.shape_cast %80 : vector<8xf32> to vector<8x1xf32>
    %cst_44 = arith.constant 5.120000e+02 : f32
    %82 = vector.broadcast %cst_44 : f32 to vector<8x1xf32>
    %83 = arith.divf %78, %82 : vector<8x1xf32>
    %cst_45 = arith.constant 5.120000e+02 : f32
    %84 = vector.broadcast %cst_45 : f32 to vector<8x1xf32>
    %85 = arith.divf %81, %84 : vector<8x1xf32>
    %86 = arith.mulf %83, %83 : vector<8x1xf32>
    %87 = arith.subf %85, %86 : vector<8x1xf32>
    %c0_46 = arith.constant 0 : index
    %c0_47 = arith.constant 0 : index
    %88 = vector.load %arg6[%c0_46, %c0_47] : memref<8x1xf32, #tpu.memory_space<vmem>>, vector<8x1xf32>
    %cst_48 = arith.constant 9.99999974E-6 : f32
    %89 = vector.broadcast %cst_48 : f32 to vector<8x1xf32>
    %90 = arith.addf %87, %89 : vector<8x1xf32>
    %91 = math.rsqrt %90 : vector<8x1xf32>
    %92 = arith.mulf %88, %91 : vector<8x1xf32>
    %c0_49 = arith.constant 0 : index
    %c0_50 = arith.constant 0 : index
    %93 = vector.load %arg7[%c0_49, %c0_50] : memref<8x1xf32, #tpu.memory_space<vmem>>, vector<8x1xf32>
    %94 = arith.mulf %83, %92 : vector<8x1xf32>
    %95 = arith.subf %93, %94 : vector<8x1xf32>
    %96 = vector.broadcast %92 : vector<8x1xf32> to vector<8x512xf32>
    %97 = arith.mulf %76, %96 : vector<8x512xf32>
    %98 = vector.broadcast %95 : vector<8x1xf32> to vector<8x512xf32>
    %99 = arith.addf %97, %98 : vector<8x512xf32>
    %c0_51 = arith.constant 0 : index
    %c0_52 = arith.constant 0 : index
    %100 = vector.load %arg8[%c0_51, %c0_52] : memref<8x512xf32, #tpu.memory_space<vmem>>, vector<8x512xf32>
    tpu.vector_store %arg8[%c0_51, %c0_52], %99 {strides = array<i32>} : memref<8x512xf32, #tpu.memory_space<vmem>>, vector<8x512xf32>,
    return
  }
  func.func @transform_0(%arg0: i32) -> (i32, i32, i32) {
    %c0_i32 = arith.constant 0 : i32
    %c0_i32_0 = arith.constant 0 : i32
    %c0_i32_1 = arith.constant 0 : i32
    %c0_i32_2 = arith.constant 0 : i32
    return %c0_i32, %c0_i32_0, %c0_i32_1 : i32, i32, i32
  }
  func.func @transform_1(%arg0: i32) -> (i32, i32, i32) {
    %c0_i32 = arith.constant 0 : i32
    %c0_i32_0 = arith.constant 0 : i32
    %c0_i32_1 = arith.constant 0 : i32
    %c0_i32_2 = arith.constant 0 : i32
    return %c0_i32, %c0_i32_0, %c0_i32_1 : i32, i32, i32
  }
  func.func @transform_2(%arg0: i32) -> (i32, i32) {
    %c0_i32 = arith.constant 0 : i32
    %c0_i32_0 = arith.constant 0 : i32
    %c0_i32_1 = arith.constant 0 : i32
    return %c0_i32, %c0_i32_0 : i32, i32
  }
  func.func @transform_3(%arg0: i32) -> (i32, i32) {
    %c0_i32 = arith.constant 0 : i32
    %c0_i32_0 = arith.constant 0 : i32
    %c0_i32_1 = arith.constant 0 : i32
    return %c0_i32, %c0_i32_0 : i32, i32
  }
  func.func @transform_4(%arg0: i32) -> (i32, i32) {
    %c0_i32 = arith.constant 0 : i32
    %c0_i32_0 = arith.constant 0 : i32
    %c0_i32_1 = arith.constant 0 : i32
    return %c0_i32, %c0_i32_0 : i32, i32
  }
  func.func @transform_5(%arg0: i32) -> (i32, i32) {
    %c0_i32 = arith.constant 0 : i32
    %c0_i32_0 = arith.constant 0 : i32
    %c0_i32_1 = arith.constant 0 : i32
    return %c0_i32, %c0_i32_0 : i32, i32
  }
  func.func @transform_6(%arg0: i32) -> (i32, i32) {
    %c0_i32 = arith.constant 0 : i32
    %c0_i32_0 = arith.constant 0 : i32
    %c0_i32_1 = arith.constant 0 : i32
    return %c0_i32, %c0_i32_0 : i32, i32
  }
  func.func @transform_7(%arg0: i32) -> (i32, i32) {
    %c0_i32 = arith.constant 0 : i32
    %c0_i32_0 = arith.constant 0 : i32
    %c0_i32_1 = arith.constant 0 : i32
    return %c0_i32, %c0_i32_0 : i32, i32
  }
}

</mosaic_0001>

<llo_original>
// kernel: tpu_custom_call.1
$region0: #{tpu_custom_call.1}
  #allocation0 [shape = 'u32[]', space=smem, size = 0x4, offset = 0x4, fixed_abs, tag = 'smem constant byte address 0x4 - core index']
  #allocation1 [shape = 'u32[144,128]{1,0:T(1,128)}', space=vmem, size = 0x12000, scoped, tag = 'internal scratch']
  %s0 = inlined_call_operand.vmem [shape: f32[4,4,128], index: 0, kind: input, shape index: {}]
  %s1 = inlined_call_operand.vmem [shape: f32[9,4,1], index: 1, kind: input, shape index: {}]
  %s2 = inlined_call_operand.vmem [shape: f32[8,4], index: 2, kind: input, shape index: {}]
  %s3 = inlined_call_operand.vmem [shape: f32[4,1], index: 3, kind: input, shape index: {}]
  %s4 = inlined_call_operand.vmem [shape: f32[4,1], index: 4, kind: input, shape index: {}]
  %s5 = inlined_call_operand.vmem [shape: f32[8,1], index: 5, kind: input, shape index: {}]
  %s6 = inlined_call_operand.vmem [shape: f32[8,1], index: 6, kind: input, shape index: {}]
  %s7 = inlined_call_operand.hbm [shape: f32[8,512], index: 7, kind: output, shape index: {}]
  %s8 = sld [smem:[#allocation0]]
  $region38: #{tpu_custom_call.1} parent=0
    _
  %s10 = ssub.s32 1, %s8
  %s11 = scalar_select 0, %s10, %s8
  $region1: #{tpu_custom_call.1} parent=0
    #allocation2 [shape = 'u8[16384]{0}', space=vmem, size = 0x4000, scoped, tag = 'output window, operand 0, single buffered']
    #allocation3 [shape = 's32[1]{0}', space=sflag, size = 0x4, scoped, tag = 'scoped memory for tpu_custom_call.1']
    %12 = vsyncpa [#allocation3], 0
    // Predicated region
    $region2: #{tpu_custom_call.1} parent=1 // pred_check
      _
    $region3: #{tpu_custom_call.1} parent=1 // pred_check_branch
      %14 = sbr.rel (0) target = $region5
    $region4: #{tpu_custom_call.1} parent=1 // pred_region
      _
    $region5: #{tpu_custom_call.1} parent=1 // pred_fallthru
      _
    // Predicated region
    $region6: #{tpu_custom_call.1} parent=1 // pred_check
      _
    $region7: #{tpu_custom_call.1} parent=1 // pred_check_branch
      %16 = sbr.rel (0) target = $region9
    $region8: #{tpu_custom_call.1} parent=1 // pred_region
      _
    $region9: #{tpu_custom_call.1} parent=1 // pred_fallthru
      _
    // Predicated region
    $region10: #{tpu_custom_call.1} parent=1 // pred_check
      _
    $region11: #{tpu_custom_call.1} parent=1 // pred_check_branch
      %18 = sbr.rel (0) target = $region13
    $region12: #{tpu_custom_call.1} parent=1 // pred_region
      _
    $region13: #{tpu_custom_call.1} parent=1 // pred_fallthru
      _
    // Predicated region
    $region14: #{tpu_custom_call.1} parent=1 // pred_check
      _
    $region15: #{tpu_custom_call.1} parent=1 // pred_check_branch
      %20 = sbr.rel (0) target = $region17
    $region16: #{tpu_custom_call.1} parent=1 // pred_region
      _
    $region17: #{tpu_custom_call.1} parent=1 // pred_fallthru
      _
    // Predicated region
    $region18: #{tpu_custom_call.1} parent=1 // pred_check
      _
    $region19: #{tpu_custom_call.1} parent=1 // pred_check_branch
      %22 = sbr.rel (0) target = $region21
    $region20: #{tpu_custom_call.1} parent=1 // pred_region
      _
    $region21: #{tpu_custom_call.1} parent=1 // pred_fallthru
      _
    // Predicated region
    $region22: #{tpu_custom_call.1} parent=1 // pred_check
      _
    $region23: #{tpu_custom_call.1} parent=1 // pred_check_branch
      %24 = sbr.rel (0) target = $region25
    $region24: #{tpu_custom_call.1} parent=1 // pred_region
      _
    $region25: #{tpu_custom_call.1} parent=1 // pred_fallthru
      _
    // Predicated region
    $region26: #{tpu_custom_call.1} parent=1 // pred_check
      _
    $region27: #{tpu_custom_call.1} parent=1 // pred_check_branch
      %26 = sbr.rel (0) target = $region29
    $region28: #{tpu_custom_call.1} parent=1 // pred_region
      _
    $region29: #{tpu_custom_call.1} parent=1 // pred_fallthru
      _
    %v27 = vld [vmem:[%s0] sm:$0xf]
    %s28 = scalar_lea.vmem %s0, 4
    %v29 = vld [vmem:[%s28] sm:$0xf]
    %s30 = scalar_lea.vmem %s0, 8
    %v31 = vld [vmem:[%s30] sm:$0xf]
    %s32 = scalar_lea.vmem %s0, 12
    %v33 = vld [vmem:[%s32] sm:$0xf]
    %s34 = scalar_lea.vmem %s1, 16
    %v35 = vld [vmem:[%s34] sm:$0xf]
    %37 = vset.pattern.permute.xlu0 0
    %38 = vperm.xlu0 %37, %v35
    %v39 = vpop.permute.xlu0 %38
    %v41 = vmul.f32 %v27, %v39
    %s42 = scalar_lea.vmem %s1, 20
    %v43 = vld [vmem:[%s42] sm:$0xf]
    %45 = vset.pattern.permute.xlu0 0
    %46 = vperm.xlu0 %45, %v43
    %v47 = vpop.permute.xlu0 %46
    %v49 = vmul.f32 %v27, %v47
    %s50 = scalar_lea.vmem %s1, 12
    %v51 = vld [vmem:[%s50] sm:$0xf]
    %53 = vset.pattern.permute.xlu0 0
    %54 = vperm.xlu0 %53, %v51
    %v55 = vpop.permute.xlu0 %54
    %v57 = vmul.f32 %v29, %v55
    %v58 = vadd.f32 %v49, %v57
    %s59 = scalar_lea.vmem %s1, 28
    %v60 = vld [vmem:[%s59] sm:$0xf]
    %62 = vset.pattern.permute.xlu0 0
    %63 = vperm.xlu0 %62, %v60
    %v64 = vpop.permute.xlu0 %63
    %v66 = vmul.f32 %v27, %v64
    %s67 = scalar_lea.vmem %s1, 4
    %v68 = vld [vmem:[%s67] sm:$0xf]
    %70 = vset.pattern.permute.xlu0 0
    %71 = vperm.xlu0 %70, %v68
    %v72 = vpop.permute.xlu0 %71
    %v74 = vmul.f32 %v31, %v72
    %v75 = vadd.f32 %v66, %v74
    %s76 = scalar_lea.vmem %s1, 32
    %v77 = vld [vmem:[%s76] sm:$0xf]
    %79 = vset.pattern.permute.xlu0 0
    %80 = vperm.xlu0 %79, %v77
    %v81 = vpop.permute.xlu0 %80
    %v83 = vmul.f32 %v27, %v81
    %s84 = scalar_lea.vmem %s1, 24
    %v85 = vld [vmem:[%s84] sm:$0xf]
    %87 = vset.pattern.permute.xlu0 0
    %88 = vperm.xlu0 %87, %v85
    %v89 = vpop.permute.xlu0 %88
    %v91 = vmul.f32 %v29, %v89
    %v92 = vadd.f32 %v83, %v91
    %s93 = scalar_lea.vmem %s1, 8
    %v94 = vld [vmem:[%s93] sm:$0xf]
    %96 = vset.pattern.permute.xlu0 0
    %97 = vperm.xlu0 %96, %v94
    %v98 = vpop.permute.xlu0 %97
    %v100 = vmul.f32 %v31, %v98
    %v101 = vadd.f32 %v92, %v100
    %v102 = vld [vmem:[%s1] sm:$0xf]
    %104 = vset.pattern.permute.xlu0 0
    %105 = vperm.xlu0 %104, %v102
    %v106 = vpop.permute.xlu0 %105
    %v108 = vmul.f32 %v33, %v106
    %v109 = vadd.f32 %v101, %v108
    %vm110 = vcmask 1043456
    %v111 = vsel %vm110, %v41, 0.0
    %v112 = vsel %vm110, %v58, 0.0
    %v113 = vadd.f32 %v111, %v112
    %v114 = vsel %vm110, %v75, 0.0
    %v115 = vadd.f32 %v113, %v114
    %v116 = vsel %vm110, %v109, 0.0
    %v117 = vadd.f32 %v115, %v116
    %118 = vadd.xlane.f32.xlu0 %v117
    %v119 = vpop.xlane.xlu0 %118
    %v120 = vmul.f32 %v41, %v41
    %v121 = vmul.f32 %v58, %v58
    %v122 = vmul.f32 %v75, %v75
    %v123 = vmul.f32 %v109, %v109
    %v124 = vsel %vm110, %v120, 0.0
    %v125 = vsel %vm110, %v121, 0.0
    %v126 = vadd.f32 %v124, %v125
    %v127 = vsel %vm110, %v122, 0.0
    %v128 = vadd.f32 %v126, %v127
    %v129 = vsel %vm110, %v123, 0.0
    %v130 = vadd.f32 %v128, %v129
    %131 = vadd.xlane.f32.xlu0 %v130
    %v132 = vpop.xlane.xlu0 %131
    %v133 = vrcp.pop 512.0
    %v134 = vmul.f32 %v119, %v133
    %v135 = vmul.f32 %v132, %v133
    %v136 = vmul.f32 %v134, %v134
    %v137 = vsub.f32 %v135, %v136
    %v138 = vld [vmem:[%s3] sm:$0xf]
    %v139 = vadd.f32 %v137, 1e-05
    %v140 = vrsqrt.pop %v139
    %v141 = vmul.f32 %v138, %v140
    %v142 = vld [vmem:[%s4] sm:$0xf]
    %v143 = vmul.f32 %v134, %v141
    %v144 = vsub.f32 %v142, %v143
    %146 = vset.pattern.permute.xlu0 0
    %147 = vperm.xlu0 %146, %v141
    %v148 = vpop.permute.xlu0 %147
    %v150 = vmul.f32 %v41, %v148
    %v151 = vmul.f32 %v58, %v148
    %v152 = vmul.f32 %v75, %v148
    %v153 = vmul.f32 %v109, %v148
    %155 = vset.pattern.permute.xlu0 0
    %156 = vperm.xlu0 %155, %v144
    %v157 = vpop.permute.xlu0 %156
    %v159 = vadd.f32 %v150, %v157
    %v160 = vadd.f32 %v151, %v157
    %v161 = vadd.f32 %v152, %v157
    %v162 = vadd.f32 %v153, %v157
    %v163 = vmax.f32 %v159, 0.0
    %v164 = vmax.f32 %v160, 0.0
    %v165 = vmax.f32 %v161, 0.0
    %v166 = vmax.f32 %v162, 0.0
    %v167 = vld [vmem:[%s2] sm:$0xff]
    %vm168 = vcmask 31744
    %v170 = vsel %vm168, %v167, 0
    %v173 = vsel %vm110, %v163, 0
    %v176 = vsel %vm110, %v164, 0
    %v179 = vsel %vm110, %v165, 0
    %v182 = vsel %vm110, %v166, 0
    %184 = vmatprep.subr.mxu0 0.0
    %185 = vmatpush1.msra.mxu0 0.0
    %186 = vmatprep.subr.mxu0 0.0
    %187 = vmatpush1.msra.mxu0 0.0
    %188 = vmatprep.subr.mxu0 0.0
    %189 = vmatpush1.msra.mxu0 0.0
    %190 = vmatprep.subr.mxu0 0.0
    %191 = vmatpush1.msra.mxu0 0.0
    %192 = vmatprep.subr.mxu0 0.0
    %193 = vmatpush1.msra.mxu0 0.0
    %194 = vmatprep.subr.mxu0 0.0
    %195 = vmatpush1.msra.mxu0 0.0
    %196 = vmatprep.subr.mxu0 0.0
    %197 = vmatpush1.msra.mxu0 0.0
    %198 = vmatprep.subr.mxu0 0.0
    %199 = vmatpush1.msra.mxu0 0.0
    %200 = vmatprep.subr.mxu0 0.0
    %201 = vmatpush1.msra.mxu0 0.0
    %202 = vmatprep.subr.mxu0 0.0
    %203 = vmatpush1.msra.mxu0 0.0
    %204 = vmatprep.subr.mxu0 0.0
    %205 = vmatpush1.msra.mxu0 0.0
    %206 = vmatprep.subr.mxu0 0.0
    %207 = vmatpush1.msra.mxu0 0.0
    %208 = vmatprep.subr.mxu0 0.0
    %209 = vmatpush1.msra.mxu0 0.0
    %210 = vmatprep.subr.mxu0 0.0
    %211 = vmatpush1.msra.mxu0 0.0
    %212 = vmatprep.subr.mxu0 0.0
    %213 = vmatpush1.msra.mxu0 0.0
    %214 = vmatprep.subr.mxu0 %v176
    %215 = vmatpush1.msra.mxu0 %v173
    %216 = vmatprep.subr.mxu0 0.0
    %217 = vmatpush2.msra.mxu0 0.0
    %218 = vmatprep.subr.mxu0 0.0
    %219 = vmatpush2.msra.mxu0 0.0
    %220 = vmatprep.subr.mxu0 0.0
    %221 = vmatpush2.msra.mxu0 0.0
    %222 = vmatprep.subr.mxu0 0.0
    %223 = vmatpush2.msra.mxu0 0.0
    %224 = vmatprep.subr.mxu0 0.0
    %225 = vmatpush2.msra.mxu0 0.0
    %226 = vmatprep.subr.mxu0 0.0
    %227 = vmatpush2.msra.mxu0 0.0
    %228 = vmatprep.subr.mxu0 0.0
    %229 = vmatpush2.msra.mxu0 0.0
    %230 = vmatprep.subr.mxu0 0.0
    %231 = vmatpush2.msra.mxu0 0.0
    %232 = vmatprep.subr.mxu0 0.0
    %233 = vmatpush2.msra.mxu0 0.0
    %234 = vmatprep.subr.mxu0 0.0
    %235 = vmatpush2.msra.mxu0 0.0
    %236 = vmatprep.subr.mxu0 0.0
    %237 = vmatpush2.msra.mxu0 0.0
    %238 = vmatprep.subr.mxu0 0.0
    %239 = vmatpush2.msra.mxu0 0.0
    %240 = vmatprep.subr.mxu0 0.0
    %241 = vmatpush2.msra.mxu0 0.0
    %242 = vmatprep.subr.mxu0 0.0
    %243 = vmatpush2.msra.mxu0 0.0
    %244 = vmatprep.subr.mxu0 0.0
    %245 = vmatpush2.msra.mxu0 0.0
    %246 = vmatprep.subr.mxu0 0.0
    %247 = vmatpush2.msra.mxu0 0.0
    %248 = vmatprep.mubr.f32.mxu0 0.0
    %249 = vmatmul.mubr.f32.gmra.mxu0 %v170
    %v250 = vpop.f32.mrf.mxu0
    %v251 = vadd.f32 0.0, %v250
    %v252 = vpop.f32.mrf.mxu0
    %v253 = vadd.f32 0.0, %v252
    %254 = vdwg.mxu0
    %255 = vmatprep.subr.mxu0 0.0
    %256 = vmatpush1.msra.mxu0 0.0
    %257 = vmatprep.subr.mxu0 0.0
    %258 = vmatpush1.msra.mxu0 0.0
    %259 = vmatprep.subr.mxu0 0.0
    %260 = vmatpush1.msra.mxu0 0.0
    %261 = vmatprep.subr.mxu0 0.0
    %262 = vmatpush1.msra.mxu0 0.0
    %263 = vmatprep.subr.mxu0 0.0
    %264 = vmatpush1.msra.mxu0 0.0
    %265 = vmatprep.subr.mxu0 0.0
    %266 = vmatpush1.msra.mxu0 0.0
    %267 = vmatprep.subr.mxu0 0.0
    %268 = vmatpush1.msra.mxu0 0.0
    %269 = vmatprep.subr.mxu0 0.0
    %270 = vmatpush1.msra.mxu0 0.0
    %271 = vmatprep.subr.mxu0 0.0
    %272 = vmatpush1.msra.mxu0 0.0
    %273 = vmatprep.subr.mxu0 0.0
    %274 = vmatpush1.msra.mxu0 0.0
    %275 = vmatprep.subr.mxu0 0.0
    %276 = vmatpush1.msra.mxu0 0.0
    %277 = vmatprep.subr.mxu0 0.0
    %278 = vmatpush1.msra.mxu0 0.0
    %279 = vmatprep.subr.mxu0 0.0
    %280 = vmatpush1.msra.mxu0 0.0
    %281 = vmatprep.subr.mxu0 0.0
    %282 = vmatpush1.msra.mxu0 0.0
    %283 = vmatprep.subr.mxu0 0.0
    %284 = vmatpush1.msra.mxu0 0.0
    %285 = vmatprep.subr.mxu0 %v182
    %286 = vmatpush1.msra.mxu0 %v179
    %287 = vmatprep.subr.mxu0 0.0
    %288 = vmatpush2.msra.mxu0 0.0
    %289 = vmatprep.subr.mxu0 0.0
    %290 = vmatpush2.msra.mxu0 0.0
    %291 = vmatprep.subr.mxu0 0.0
    %292 = vmatpush2.msra.mxu0 0.0
    %293 = vmatprep.subr.mxu0 0.0
    %294 = vmatpush2.msra.mxu0 0.0
    %295 = vmatprep.subr.mxu0 0.0
    %296 = vmatpush2.msra.mxu0 0.0
    %297 = vmatprep.subr.mxu0 0.0
    %298 = vmatpush2.msra.mxu0 0.0
    %299 = vmatprep.subr.mxu0 0.0
    %300 = vmatpush2.msra.mxu0 0.0
    %301 = vmatprep.subr.mxu0 0.0
    %302 = vmatpush2.msra.mxu0 0.0
    %303 = vmatprep.subr.mxu0 0.0
    %304 = vmatpush2.msra.mxu0 0.0
    %305 = vmatprep.subr.mxu0 0.0
    %306 = vmatpush2.msra.mxu0 0.0
    %307 = vmatprep.subr.mxu0 0.0
    %308 = vmatpush2.msra.mxu0 0.0
    %309 = vmatprep.subr.mxu0 0.0
    %310 = vmatpush2.msra.mxu0 0.0
    %311 = vmatprep.subr.mxu0 0.0
    %312 = vmatpush2.msra.mxu0 0.0
    %313 = vmatprep.subr.mxu0 0.0
    %314 = vmatpush2.msra.mxu0 0.0
    %315 = vmatprep.subr.mxu0 0.0
    %316 = vmatpush2.msra.mxu0 0.0
    %317 = vmatprep.subr.mxu0 0.0
    %318 = vmatpush2.msra.mxu0 0.0
    %319 = vmatprep.mubr.f32.mxu0 0.0
    %320 = vmatmul.mubr.f32.gmra.mxu0 %v170
    %v321 = vpop.f32.mrf.mxu0
    %v322 = vadd.f32 0.0, %v321
    %v323 = vpop.f32.mrf.mxu0
    %v324 = vadd.f32 0.0, %v323
    %325 = vdwg.mxu0
    %v326 = vadd.f32 %v251, %v253
    %v327 = vadd.f32 %v326, %v322
    %v328 = vadd.f32 %v327, %v324
    %329 = vadd.xlane.f32.xlu0 %v328
    %v330 = vpop.xlane.xlu0 %329
    %v331 = vmul.f32 %v251, %v251
    %v332 = vmul.f32 %v253, %v253
    %v333 = vmul.f32 %v322, %v322
    %v334 = vmul.f32 %v324, %v324
    %v335 = vadd.f32 %v331, %v332
    %v336 = vadd.f32 %v335, %v333
    %v337 = vadd.f32 %v336, %v334
    %338 = vadd.xlane.f32.xlu0 %v337
    %v339 = vpop.xlane.xlu0 %338
    %v340 = vmul.f32 %v330, %v133
    %v341 = vmul.f32 %v339, %v133
    %v342 = vmul.f32 %v340, %v340
    %v343 = vsub.f32 %v341, %v342
    %v344 = vld [vmem:[%s5] sm:$0xff]
    %v345 = vadd.f32 %v343, 1e-05
    %v346 = vrsqrt.pop %v345
    %v347 = vmul.f32 %v344, %v346
    %v348 = vld [vmem:[%s6] sm:$0xff]
    %v349 = vmul.f32 %v340, %v347
    %v350 = vsub.f32 %v348, %v349
    %352 = vset.pattern.permute.xlu0 0
    %353 = vperm.xlu0 %352, %v347
    %v354 = vpop.permute.xlu0 %353
    %v356 = vmul.f32 %v251, %v354
    %v357 = vmul.f32 %v253, %v354
    %v358 = vmul.f32 %v322, %v354
    %v359 = vmul.f32 %v324, %v354
    %361 = vset.pattern.permute.xlu0 0
    %362 = vperm.xlu0 %361, %v350
    %v363 = vpop.permute.xlu0 %362
    %v365 = vadd.f32 %v356, %v363
    %v366 = vadd.f32 %v357, %v363
    %v367 = vadd.f32 %v358, %v363
    %v368 = vadd.f32 %v359, %v363
    %369 = vst [vmem:[#allocation2] sm:$0xff] %v365
    %370 = vst [vmem:[#allocation2 + $0x8] sm:$0xff] %v366
    %371 = vst [vmem:[#allocation2 + $0x10] sm:$0xff] %v367
    %372 = vst [vmem:[#allocation2 + $0x18] sm:$0xff] %v368
    // Predicated region
    $region30: #{tpu_custom_call.1} parent=1 // pred_check
      _
    $region31: #{tpu_custom_call.1} parent=1 // pred_check_branch
      %374 = sbr.rel (0) target = $region33
    $region32: #{tpu_custom_call.1} parent=1 // pred_region
      %s376 = ssub.s32 512, 512
      %377 = vsyncadd [#allocation3], %s376
      %s379 = sshll.u32 [#allocation2], 4
      %s380 = int_to_ptr.vmem [resolvable:$true] %s379
      %382 = dma.vmem_to_hbm [thread:$0]  %s380, 512, %s7, [#allocation3]
    $region33: #{tpu_custom_call.1} parent=1 // pred_fallthru
      _
    // Predicated region
    $region34: #{tpu_custom_call.1} parent=1 // pred_check
      _
    $region35: #{tpu_custom_call.1} parent=1 // pred_check_branch
      %384 = sbr.rel (0) target = $region37
    $region36: #{tpu_custom_call.1} parent=1 // pred_region
      %385 = dma.done [#allocation3], 512
    $region37: #{tpu_custom_call.1} parent=1 // pred_fallthru
      _
    %386 = vsyncpa [#allocation3], 1

</llo_original>
